<compile_context>
chip_gen: v7x
topology: tpu7x:2x2x1
jax: 0.10.0
libtpu: 0.0.40
codegen_flags: <defaults>
</compile_context>

<pallas_src>
import jax
import jax.numpy as jnp
from jax.experimental import pallas as pl
from jax.experimental.pallas import tpu as pltpu


def _h_sigmoid_kernel(x_ref, o_ref):
    xf = x_ref[...].astype(jnp.float32)
    y = jnp.clip(xf + 3.0, 0.0, 6.0) * (1.0 / 6.0)
    o_ref[...] = y.astype(o_ref.dtype)


def _h_sigmoid_ref(x):
    # Pure-JAX reference / tiny-input fallback.
    return (jnp.clip(x.astype(jnp.float32) + 3.0, 0.0, 6.0) * (1.0 / 6.0)).astype(x.dtype)


def h_sigmoid(x: jax.Array) -> jax.Array:
    """h_sigmoid forward: relu6(x + 3) / 6, any-rank input (NCHW in the model)."""
    orig_shape = x.shape
    orig_dtype = x.dtype
    total = int(x.size)

    # Tiny / sub-tile inputs: not worth a pallas_call launch.
    if total < 8 * 128:
        return _h_sigmoid_ref(x)

    flat = x.reshape(-1)

    # Pick the largest lane width (multiple of 128) that divides the total so
    # no padding copy is needed; otherwise pad minimally to a multiple of 128.
    lane = None
    for cand in (1024, 512, 256, 128):
        if total % cand == 0:
            lane = cand
            break
    padded_total = total
    if lane is None:
        lane = 128
        padded_total = ((total + lane - 1) // lane) * lane
        flat = jnp.pad(flat, (0, padded_total - total))

    rows = padded_total // lane
    x2 = flat.reshape(rows, lane)

    itemsize = jnp.dtype(orig_dtype).itemsize
    # Row alignment so sub-32-bit dtypes keep their packed sublane tiling:
    # f32 -> 8, bf16 -> 16, int8/fp8 -> 32.
    row_align = max(8, 32 // max(itemsize, 1))

    # Target ~2 MiB per block: amortizes per-grid-step overhead, and with
    # default double-buffering of input + output stays ~8 MiB of VMEM.
    target_bytes = 2 << 20
    target_rows = max(row_align, target_bytes // (lane * itemsize))
    if rows <= target_rows:
        tile_rows = rows              # single row-block: full-dim escape hatch
    else:
        tile_rows = (target_rows // row_align) * row_align

    grid_r = pl.cdiv(rows, tile_rows)

    out2 = pl.pallas_call(
        _h_sigmoid_kernel,
        out_shape=jax.ShapeDtypeStruct((rows, lane), orig_dtype),
        grid=(grid_r,),
        in_specs=[pl.BlockSpec((tile_rows, lane), lambda i: (i, 0))],
        out_specs=pl.BlockSpec((tile_rows, lane), lambda i: (i, 0)),
        compiler_params=pltpu.CompilerParams(
            dimension_semantics=("parallel",)),
    )(x2)

    out = out2.reshape(-1)
    if padded_total != total:
        out = out[:total]
    return out.reshape(orig_shape)


if __name__ == "__main__":
    key = jax.random.PRNGKey(0)
    k1, k2, k3, k4 = jax.random.split(key, 4)

    # 1) Small NCHW activation (module's typical use): single lane-dense block
    #    (2048 elems -> (2, 1024) view).
    x_small = jax.random.normal(k1, (2, 4, 16, 16), dtype=jnp.float32) * 4.0
    y_small = jax.block_until_ready(h_sigmoid(x_small))
    assert y_small.shape == x_small.shape and y_small.dtype == x_small.dtype
    assert jnp.allclose(y_small, _h_sigmoid_ref(x_small), atol=1e-6, rtol=1e-6)

    # 2) Larger activation: exercises the multi-step tiled/pipelined grid
    #    (1,048,576 elems = 4 MiB f32 -> two ~2 MiB blocks).
    x_big = jax.random.normal(k2, (4, 64, 64, 64), dtype=jnp.float32) * 4.0
    y_big = jax.block_until_ready(h_sigmoid(x_big))
    assert y_big.shape == x_big.shape and y_big.dtype == x_big.dtype
    assert jnp.allclose(y_big, _h_sigmoid_ref(x_big), atol=1e-6, rtol=1e-6)

    # 3) bf16 input: single up/down cast inside the kernel, 16-row alignment.
    x_bf16 = (jax.random.normal(k3, (2, 8, 32, 32), dtype=jnp.float32) * 4.0).astype(jnp.bfloat16)
    y_bf16 = jax.block_until_ready(h_sigmoid(x_bf16))
    assert y_bf16.shape == x_bf16.shape and y_bf16.dtype == jnp.bfloat16
    assert jnp.allclose(y_bf16.astype(jnp.float32),
                        _h_sigmoid_ref(x_bf16).astype(jnp.float32),
                        atol=1e-2, rtol=1e-2)

    # 4) Sub-tile input: plain-JAX fallback path.
    x_tiny = jax.random.normal(k4, (7,), dtype=jnp.float32) * 4.0
    y_tiny = jax.block_until_ready(h_sigmoid(x_tiny))
    assert jnp.allclose(y_tiny, _h_sigmoid_ref(x_tiny), atol=1e-6, rtol=1e-6)

    print("KERNEL_OK")
</pallas_src>

<mosaic_0001>
module attributes {stable_mosaic.version = 11 : i64} {
  func.func @_h_sigmoid_kernel(%arg0: i32, %arg1: memref<2x1024xf32, #tpu.memory_space<vmem>>, %arg2: memref<2x1024xf32, #tpu.memory_space<vmem>>) attributes {dimension_semantics = [#tpu.dimension_semantics<parallel>], iteration_bounds = array<i64: 1>, scalar_prefetch = 0 : i64, scratch_operands = 0 : i64, tpu.core_type = #tpu.core_type<tc>, window_params = [{transform_indices = @transform_0, window_bounds = array<i64: 2, 1024>}, {transform_indices = @transform_1, window_bounds = array<i64: 2, 1024>}]} {
    %c0 = arith.constant 0 : index
    %c0_0 = arith.constant 0 : index
    %0 = vector.load %arg1[%c0, %c0_0] : memref<2x1024xf32, #tpu.memory_space<vmem>>, vector<2x1024xf32>
    %cst = arith.constant 3.000000e+00 : f32
    %1 = vector.broadcast %cst : f32 to vector<2x1024xf32>
    %2 = arith.addf %0, %1 : vector<2x1024xf32>
    %cst_1 = arith.constant 0.000000e+00 : f32
    %cst_2 = arith.constant 6.000000e+00 : f32
    %3 = vector.broadcast %cst_1 : f32 to vector<2x1024xf32>
    %4 = arith.maximumf %3, %2 : vector<2x1024xf32>
    %5 = vector.broadcast %cst_2 : f32 to vector<2x1024xf32>
    %6 = arith.minimumf %5, %4 : vector<2x1024xf32>
    %cst_3 = arith.constant 0.166666672 : f32
    %7 = vector.broadcast %cst_3 : f32 to vector<2x1024xf32>
    %8 = arith.mulf %6, %7 : vector<2x1024xf32>
    %c0_4 = arith.constant 0 : index
    %c0_5 = arith.constant 0 : index
    %9 = vector.load %arg2[%c0_4, %c0_5] : memref<2x1024xf32, #tpu.memory_space<vmem>>, vector<2x1024xf32>
    tpu.vector_store %arg2[%c0_4, %c0_5], %8 {strides = array<i32>} : memref<2x1024xf32, #tpu.memory_space<vmem>>, vector<2x1024xf32>,
    return
  }
  func.func @transform_0(%arg0: i32) -> (i32, i32) {
    %c0_i32 = arith.constant 0 : i32
    %c0_i32_0 = arith.constant 0 : i32
    return %arg0, %c0_i32 : i32, i32
  }
  func.func @transform_1(%arg0: i32) -> (i32, i32) {
    %c0_i32 = arith.constant 0 : i32
    %c0_i32_0 = arith.constant 0 : i32
    return %arg0, %c0_i32 : i32, i32
  }
}

</mosaic_0001>

<llo_original>
// kernel: tpu_custom_call.1
$region0: #{tpu_custom_call.1}
  #allocation0 [shape = 'u32[]', space=smem, size = 0x4, offset = 0x4, fixed_abs, tag = 'smem constant byte address 0x4 - core index']
  #allocation1 [shape = 'u32[144,128]{1,0:T(1,128)}', space=vmem, size = 0x12000, scoped, tag = 'internal scratch']
  %s0 = inlined_call_operand.hbm [shape: f32[2,1024], index: 0, kind: input, shape index: {}]
  %s1 = inlined_call_operand.hbm [shape: f32[2,1024], index: 1, kind: output, shape index: {}]
  %s2 = sld [smem:[#allocation0]]
  $region18: #{tpu_custom_call.1} parent=0
    _
  %s4 = ssub.s32 1, %s2
  %s5 = scalar_select 0, %s4, %s2
  $region1: #{tpu_custom_call.1} parent=0
    #allocation2 [shape = 'u8[8192]{0}', space=vmem, size = 0x2000, scoped, tag = 'input window, operand 0, single buffered']
    #allocation3 [shape = 's32[1]{0}', space=sflag, size = 0x4, scoped, tag = 'scoped memory for tpu_custom_call.1']
    #allocation4 [shape = 's32[1]{0}', space=sflag, size = 0x4, scoped, tag = 'scoped memory for tpu_custom_call.1']
    #allocation5 [shape = 'u8[8192]{0}', space=vmem, size = 0x2000, scoped, tag = 'output window, operand 0, single buffered']
    %6 = vsyncpa [#allocation3], 0
    %7 = vsyncpa [#allocation4], 0
    // Predicated region
    $region2: #{tpu_custom_call.1} parent=1 // pred_check
      _
    $region3: #{tpu_custom_call.1} parent=1 // pred_check_branch
      %9 = sbr.rel (0) target = $region5
    $region4: #{tpu_custom_call.1} parent=1 // pred_region
      %s11 = ssub.s32 256, 256
      %12 = vsyncadd [#allocation3], %s11
      %s14 = sshll.u32 [#allocation2], 4
      %s15 = int_to_ptr.vmem [resolvable:$true] %s14
      %17 = dma.hbm_to_vmem [thread:$0]  %s0, 256, %s15, [#allocation3]
    $region5: #{tpu_custom_call.1} parent=1 // pred_fallthru
      _
    // Predicated region
    $region6: #{tpu_custom_call.1} parent=1 // pred_check
      _
    $region7: #{tpu_custom_call.1} parent=1 // pred_check_branch
      %19 = sbr.rel (0) target = $region9
    $region8: #{tpu_custom_call.1} parent=1 // pred_region
      %20 = dma.done [#allocation3], 256
    $region9: #{tpu_custom_call.1} parent=1 // pred_fallthru
      _
    %v21 = vld [vmem:[#allocation2] sm:$0xff]
    %v22 = vld [vmem:[#allocation2 + $0x8] sm:$0xff]
    %v23 = vadd.f32 %v21, 3.0
    %v24 = vadd.f32 %v22, 3.0
    %v25 = vmax.f32 %v23, 0.0
    %v26 = vmax.f32 %v24, 0.0
    %v27 = vmin.f32 %v25, 6.0
    %v28 = vmin.f32 %v26, 6.0
    %v29 = vmul.f32 %v27, 0.16666667
    %v30 = vmul.f32 %v28, 0.16666667
    %31 = vst [vmem:[#allocation5] sm:$0xff] %v29
    %32 = vst [vmem:[#allocation5 + $0x8] sm:$0xff] %v30
    // Predicated region
    $region10: #{tpu_custom_call.1} parent=1 // pred_check
      _
    $region11: #{tpu_custom_call.1} parent=1 // pred_check_branch
      %34 = sbr.rel (0) target = $region13
    $region12: #{tpu_custom_call.1} parent=1 // pred_region
      %s36 = ssub.s32 256, 256
      %37 = vsyncadd [#allocation4], %s36
      %s39 = sshll.u32 [#allocation5], 4
      %s40 = int_to_ptr.vmem [resolvable:$true] %s39
      %42 = dma.vmem_to_hbm [thread:$0]  %s40, 256, %s1, [#allocation4]
    $region13: #{tpu_custom_call.1} parent=1 // pred_fallthru
      _
    // Predicated region
    $region14: #{tpu_custom_call.1} parent=1 // pred_check
      _
    $region15: #{tpu_custom_call.1} parent=1 // pred_check_branch
      %44 = sbr.rel (0) target = $region17
    $region16: #{tpu_custom_call.1} parent=1 // pred_region
      %45 = dma.done [#allocation4], 256
    $region17: #{tpu_custom_call.1} parent=1 // pred_fallthru
      _
    %46 = vsyncpa [#allocation3], 1
    %47 = vsyncpa [#allocation4], 1

</llo_original>
